<compile_context>
chip_gen: v5e
topology: v5e:2x2
jax: 0.10.0
libtpu: 0.0.40
codegen_flags: <defaults>
</compile_context>

<pallas_src>
import math

import jax
import jax.numpy as jnp
from jax import lax
from jax.experimental import pallas as pl
from jax.experimental.pallas import tpu as pltpu


def _make_convblock_kernel(Hout, k, use_bn, nl):
    def kernel(x_ref, b_ref, sb_ref, o_ref):
        # k lane-dense matmuls (one per vertical filter tap), f32 accumulation.
        acc = jnp.dot(x_ref[0, 0:Hout, :], b_ref[0],
                      preferred_element_type=jnp.float32)
        for i in range(1, k):
            acc = acc + jnp.dot(x_ref[0, i:i + Hout, :], b_ref[i],
                                preferred_element_type=jnp.float32)
        y = acc                                            # (Hout, Wout*Cout) f32
        if use_bn:
            # Fused eval-mode BatchNorm: one broadcasted scale/bias, applied once.
            y = y * sb_ref[0:1, :] + sb_ref[1:2, :]
        if nl == 'ReLU':
            y = jnp.maximum(y, 0.0)
        elif nl == 'Sigmoid':
            y = jax.nn.sigmoid(y)
        o_ref[0] = y.astype(o_ref.dtype)                   # lane-dense store

    return kernel


def conv_block(x_nchw, w, *, use_bn=True, nl='ReLU', gamma=None, beta=None,
               running_mean=None, running_var=None, eps=1e-5):
    """ConvBlock forward. x: NCHW, w: OIHW (Cout, Cin, ks, ks), no conv bias."""
    assert nl in ('None', 'ReLU', 'Sigmoid')
    N, Cin, H, W = x_nchw.shape
    Cout, Cin2, k, k2 = w.shape
    assert Cin2 == Cin and k == k2 and k in (1, 3, 5, 7)
    p = (k - 1) // 2
    Hout, Wout = H, W                       # 'same' convolution
    Hpad, Wpad = H + 2 * p, W + 2 * p
    Wc = Wpad * Cin
    Wc_pad = ((Wc + 127) // 128) * 128      # lane-align each vertical tap
    Nout = Wout * Cout

    # --- input: NCHW -> NHWC -> spatially zero-padded (so the kernel never
    # handles halos), (W, Cin) folded into the lane axis and zero-padded to a
    # 128 multiple, cast to bf16.  Fuses into one XLA op. ---
    x_flat = jnp.transpose(x_nchw, (0, 2, 3, 1))
    x_flat = jnp.pad(x_flat, ((0, 0), (p, p), (p, p), (0, 0)))
    x_flat = x_flat.reshape(N, Hpad, Wc)
    x_flat = jnp.pad(x_flat, ((0, 0), (0, 0), (0, Wc_pad - Wc)))
    x_flat = x_flat.astype(jnp.bfloat16)

    # --- banded (Toeplitz) weight matrices, one per vertical tap i:
    #     B[i, wf*Cin + ci, wo*Cout + co] = w[co, ci, i, wf - wo]  (0<=wf-wo<k)
    w_t = jnp.transpose(w, (2, 3, 1, 0))                         # (ki, kj, Cin, Cout)
    jj = jnp.arange(Wpad)[:, None] - jnp.arange(Wout)[None, :]   # (Wpad, Wout)
    valid = (jj >= 0) & (jj < k)
    g = w_t[:, jnp.clip(jj, 0, k - 1), :, :]                     # (ki, Wpad, Wout, Cin, Cout)
    g = jnp.where(valid[None, :, :, None, None], g, 0.0)
    g = jnp.transpose(g, (0, 1, 3, 2, 4)).reshape(k, Wc, Nout)
    b_mat = jnp.pad(g, ((0, 0), (0, Wc_pad - Wc), (0, 0))).astype(jnp.bfloat16)

    # --- BatchNorm (eval mode) folded into a single (2, Wout*Cout) slab ---
    # TODO(synk): training-mode BatchNorm (batch statistics + running-stat
    # updates) not implemented; eval-mode running-stats BN is fused instead.
    if use_bn:
        inv_std = gamma / jnp.sqrt(running_var + eps)
        scale, bias = inv_std, beta - running_mean * inv_std
    else:
        scale = jnp.ones((Cout,), jnp.float32)
        bias = jnp.zeros((Cout,), jnp.float32)
    sb = jnp.stack([jnp.tile(scale, Wout),
                    jnp.tile(bias, Wout)]).astype(jnp.float32)   # (2, Nout)

    kernel = _make_convblock_kernel(Hout, k, use_bn, nl)

    flops = 2 * N * k * Hout * Wc_pad * Nout + 3 * N * Hout * Nout
    transc = N * Hout * Nout if nl == 'Sigmoid' else 0
    bytes_accessed = (N * Hpad * Wc_pad * 2 + k * Wc_pad * Nout * 2
                      + 2 * Nout * 4 + N * Hout * Nout * 4)

    out = pl.pallas_call(
        kernel,
        out_shape=jax.ShapeDtypeStruct((N, Hout, Nout), jnp.float32),
        grid=(N,),
        in_specs=[
            pl.BlockSpec((1, Hpad, Wc_pad), lambda n: (n, 0, 0)),
            pl.BlockSpec((k, Wc_pad, Nout), lambda n: (0, 0, 0)),
            pl.BlockSpec((2, Nout), lambda n: (0, 0)),
        ],
        out_specs=pl.BlockSpec((1, Hout, Nout), lambda n: (n, 0, 0)),
        compiler_params=pltpu.CompilerParams(
            dimension_semantics=("parallel",)),
        cost_estimate=pl.CostEstimate(flops=flops, transcendentals=transc,
                                      bytes_accessed=bytes_accessed),
    )(x_flat, b_mat, sb)

    # (N, Hout, Wout*Cout) -> NCHW
    return jnp.transpose(out.reshape(N, Hout, Wout, Cout), (0, 3, 1, 2))


def conv_block_reference(x, w, *, use_bn=True, nl='ReLU', gamma=None, beta=None,
                         running_mean=None, running_var=None, eps=1e-5):
    """Pure-JAX reference of the PyTorch forward (eval-mode BN)."""
    k = w.shape[2]
    p = (k - 1) // 2
    y = lax.conv_general_dilated(x, w, (1, 1), [(p, p), (p, p)],
                                 dimension_numbers=('NCHW', 'OIHW', 'NCHW'))
    if use_bn:
        inv = gamma / jnp.sqrt(running_var + eps)
        y = (y * inv[None, :, None, None]
             + (beta - running_mean * inv)[None, :, None, None])
    if nl == 'ReLU':
        y = jnp.maximum(y, 0.0)
    elif nl == 'Sigmoid':
        y = jax.nn.sigmoid(y)
    return y


if __name__ == "__main__":
    key = jax.random.PRNGKey(0)
    k_x, k_w, k_g, k_b, k_m, k_v = jax.random.split(key, 6)

    N, ic, oc, H, W, ks = 2, 4, 8, 16, 16, 3
    use_bn, nl = True, 'ReLU'

    x = jax.random.normal(k_x, (N, ic, H, W), jnp.float32)

    # Deterministic parameter init (Kaiming-uniform-like bounds).
    bound = 1.0 / math.sqrt(ic * ks * ks)
    w = jax.random.uniform(k_w, (oc, ic, ks, ks), jnp.float32, -bound, bound)

    # BatchNorm parameters / running statistics (inference-mode BN).
    gamma = jax.random.uniform(k_g, (oc,), jnp.float32, 0.5, 1.5)
    beta = 0.1 * jax.random.normal(k_b, (oc,), jnp.float32)
    running_mean = 0.1 * jax.random.normal(k_m, (oc,), jnp.float32)
    running_var = jax.random.uniform(k_v, (oc,), jnp.float32, 0.5, 1.5)

    out = conv_block(x, w, use_bn=use_bn, nl=nl, gamma=gamma, beta=beta,
                     running_mean=running_mean, running_var=running_var)
    out = jax.block_until_ready(out)

    ref = conv_block_reference(x, w, use_bn=use_bn, nl=nl, gamma=gamma,
                               beta=beta, running_mean=running_mean,
                               running_var=running_var)
    assert out.shape == ref.shape == (N, oc, H, W)
    # bf16 matmul operands with f32 accumulation -> loosened tolerance.
    if not jnp.allclose(out, ref, rtol=2e-2, atol=2e-2):
        raise AssertionError(
            f"mismatch vs reference, max abs err = {jnp.max(jnp.abs(out - ref))}")

    print("KERNEL_OK")
</pallas_src>

<mosaic_0001>
module attributes {stable_mosaic.version = 11 : i64} {
  func.func @kernel(%arg0: i32, %arg1: memref<1x18x128xbf16, #tpu.memory_space<vmem>>, %arg2: memref<3x128x128xbf16, #tpu.memory_space<vmem>>, %arg3: memref<2x128xf32, #tpu.memory_space<vmem>>, %arg4: memref<1x16x128xf32, #tpu.memory_space<vmem>>) attributes {dimension_semantics = [#tpu.dimension_semantics<parallel>], iteration_bounds = array<i64: 2>, scalar_prefetch = 0 : i64, scratch_operands = 0 : i64, tpu.core_type = #tpu.core_type<tc>, window_params = [{transform_indices = @transform_0, window_bounds = array<i64: 1, 18, 128>}, {pipeline_mode = #tpu.pipeline_mode<synchronous>, transform_indices = @transform_1, window_bounds = array<i64: 3, 128, 128>}, {pipeline_mode = #tpu.pipeline_mode<synchronous>, transform_indices = @transform_2, window_bounds = array<i64: 2, 128>}, {transform_indices = @transform_3, window_bounds = array<i64: 1, 16, 128>}]} {
    %c0 = arith.constant 0 : index
    %c0_0 = arith.constant 0 : index
    %c0_1 = arith.constant 0 : index
    %0 = vector.load %arg1[%c0, %c0_0, %c0_1] : memref<1x18x128xbf16, #tpu.memory_space<vmem>>, vector<1x16x128xbf16>
    %1 = vector.shape_cast %0 : vector<1x16x128xbf16> to vector<16x128xbf16>
    %c0_2 = arith.constant 0 : index
    %c0_3 = arith.constant 0 : index
    %c0_4 = arith.constant 0 : index
    %2 = vector.load %arg2[%c0_2, %c0_3, %c0_4] : memref<3x128x128xbf16, #tpu.memory_space<vmem>>, vector<1x128x128xbf16>
    %3 = vector.shape_cast %2 : vector<1x128x128xbf16> to vector<128x128xbf16>
    %cst = arith.constant dense<0.000000e+00> : vector<16x128xf32>
    %4 = tpu.matmul %1, %3, %cst {dimension_numbers = #tpu.dot_dimension_numbers<[1], [0], [0], [1], [0, 0, 1, 1], [], []>} : vector<16x128xbf16>, vector<128x128xbf16>, vector<16x128xf32> -> vector<16x128xf32>
    %c0_5 = arith.constant 0 : index
    %c1 = arith.constant 1 : index
    %c0_6 = arith.constant 0 : index
    %5 = vector.load %arg1[%c0_5, %c1, %c0_6] : memref<1x18x128xbf16, #tpu.memory_space<vmem>>, vector<1x16x128xbf16>
    %6 = vector.shape_cast %5 : vector<1x16x128xbf16> to vector<16x128xbf16>
    %c1_7 = arith.constant 1 : index
    %c0_8 = arith.constant 0 : index
    %c0_9 = arith.constant 0 : index
    %7 = vector.load %arg2[%c1_7, %c0_8, %c0_9] : memref<3x128x128xbf16, #tpu.memory_space<vmem>>, vector<1x128x128xbf16>
    %8 = vector.shape_cast %7 : vector<1x128x128xbf16> to vector<128x128xbf16>
    %cst_10 = arith.constant dense<0.000000e+00> : vector<16x128xf32>
    %9 = tpu.matmul %6, %8, %cst_10 {dimension_numbers = #tpu.dot_dimension_numbers<[1], [0], [0], [1], [0, 0, 1, 1], [], []>} : vector<16x128xbf16>, vector<128x128xbf16>, vector<16x128xf32> -> vector<16x128xf32>
    %10 = arith.addf %4, %9 : vector<16x128xf32>
    %c0_11 = arith.constant 0 : index
    %c2 = arith.constant 2 : index
    %c0_12 = arith.constant 0 : index
    %11 = vector.load %arg1[%c0_11, %c2, %c0_12] : memref<1x18x128xbf16, #tpu.memory_space<vmem>>, vector<1x16x128xbf16>
    %12 = vector.shape_cast %11 : vector<1x16x128xbf16> to vector<16x128xbf16>
    %c2_13 = arith.constant 2 : index
    %c0_14 = arith.constant 0 : index
    %c0_15 = arith.constant 0 : index
    %13 = vector.load %arg2[%c2_13, %c0_14, %c0_15] : memref<3x128x128xbf16, #tpu.memory_space<vmem>>, vector<1x128x128xbf16>
    %14 = vector.shape_cast %13 : vector<1x128x128xbf16> to vector<128x128xbf16>
    %cst_16 = arith.constant dense<0.000000e+00> : vector<16x128xf32>
    %15 = tpu.matmul %12, %14, %cst_16 {dimension_numbers = #tpu.dot_dimension_numbers<[1], [0], [0], [1], [0, 0, 1, 1], [], []>} : vector<16x128xbf16>, vector<128x128xbf16>, vector<16x128xf32> -> vector<16x128xf32>
    %16 = arith.addf %10, %15 : vector<16x128xf32>
    %c0_17 = arith.constant 0 : index
    %c0_18 = arith.constant 0 : index
    %17 = vector.load %arg3[%c0_17, %c0_18] : memref<2x128xf32, #tpu.memory_space<vmem>>, vector<1x128xf32>
    %18 = vector.broadcast %17 : vector<1x128xf32> to vector<16x128xf32>
    %19 = arith.mulf %16, %18 : vector<16x128xf32>
    %c1_19 = arith.constant 1 : index
    %c0_20 = arith.constant 0 : index
    %20 = vector.load %arg3[%c1_19, %c0_20] : memref<2x128xf32, #tpu.memory_space<vmem>>, vector<1x128xf32>
    %21 = vector.broadcast %20 : vector<1x128xf32> to vector<16x128xf32>
    %22 = arith.addf %19, %21 : vector<16x128xf32>
    %cst_21 = arith.constant 0.000000e+00 : f32
    %23 = vector.broadcast %cst_21 : f32 to vector<16x128xf32>
    %24 = arith.maximumf %22, %23 : vector<16x128xf32>
    %c0_22 = arith.constant 0 : index
    %c0_23 = arith.constant 0 : index
    %c0_24 = arith.constant 0 : index
    %25 = vector.load %arg4[%c0_22, %c0_23, %c0_24] : memref<1x16x128xf32, #tpu.memory_space<vmem>>, vector<1x16x128xf32>
    %26 = vector.shape_cast %25 : vector<1x16x128xf32> to vector<16x128xf32>
    %27 = vector.shape_cast %24 : vector<16x128xf32> to vector<1x16x128xf32>
    tpu.vector_store %arg4[%c0_22, %c0_23, %c0_24], %27 {strides = array<i32>} : memref<1x16x128xf32, #tpu.memory_space<vmem>>, vector<1x16x128xf32>,
    return
  }
  func.func @transform_0(%arg0: i32) -> (i32, i32, i32) {
    %c0_i32 = arith.constant 0 : i32
    %c0_i32_0 = arith.constant 0 : i32
    %c0_i32_1 = arith.constant 0 : i32
    return %arg0, %c0_i32, %c0_i32_0 : i32, i32, i32
  }
  func.func @transform_1(%arg0: i32) -> (i32, i32, i32) {
    %c0_i32 = arith.constant 0 : i32
    %c0_i32_0 = arith.constant 0 : i32
    %c0_i32_1 = arith.constant 0 : i32
    %c0_i32_2 = arith.constant 0 : i32
    return %c0_i32, %c0_i32_0, %c0_i32_1 : i32, i32, i32
  }
  func.func @transform_2(%arg0: i32) -> (i32, i32) {
    %c0_i32 = arith.constant 0 : i32
    %c0_i32_0 = arith.constant 0 : i32
    %c0_i32_1 = arith.constant 0 : i32
    return %c0_i32, %c0_i32_0 : i32, i32
  }
  func.func @transform_3(%arg0: i32) -> (i32, i32, i32) {
    %c0_i32 = arith.constant 0 : i32
    %c0_i32_0 = arith.constant 0 : i32
    %c0_i32_1 = arith.constant 0 : i32
    return %arg0, %c0_i32, %c0_i32_0 : i32, i32, i32
  }
}

</mosaic_0001>

<llo_original>
// kernel: tpu_custom_call.1
$region0: #{tpu_custom_call.1}
  #allocation0 [shape = 'u32[]', space=smem, size = 0x4, offset = 0x4, fixed_abs, tag = 'smem constant byte address 0x4 - core index']
  #allocation1 [shape = 'u32[72,128]{1,0:T(1,128)}', space=vmem, size = 0x9000, scoped, tag = 'internal scratch']
  %s0 = inlined_call_operand.vmem [shape: bf16[2,18,128], index: 0, kind: input, shape index: {}]
  %s1 = inlined_call_operand.hbm [shape: bf16[3,128,128], index: 1, kind: input, shape index: {}]
  %s2 = inlined_call_operand.vmem [shape: f32[2,128], index: 2, kind: input, shape index: {}]
  %s3 = inlined_call_operand.hbm [shape: f32[2,16,128], index: 3, kind: output, shape index: {}]
  %s4 = sld [smem:[#allocation0]]
  $region49: #{tpu_custom_call.1} parent=0
    _
  %s6 = ssub.s32 1, %s4
  %s7 = scalar_select 0, %s6, %s4
  $region1: #{tpu_custom_call.1} parent=0
    #allocation2 [shape = 'u8[98304]{0}', space=vmem, size = 0x18000, scoped, tag = 'input window, operand 1, single buffered']
    #allocation3 [shape = 's32[2]{0}', space=sflag, size = 0x8, scoped, tag = 'scoped memory for tpu_custom_call.1']
    #allocation4 [shape = 's32[2]{0}', space=sflag, size = 0x8, scoped, tag = 'scoped memory for tpu_custom_call.1']
    #allocation5 [shape = 'u8[16384]{0}', space=vmem, size = 0x4000, scoped, tag = 'output window, operand 0']
    %8 = vsyncpa [#allocation3], 0
    %9 = vsyncpa [#allocation4], 0
    %s10 = scalar_lea.sflag [#allocation4], 1
    %11 = vsyncpa %s10, 0
    loop: start=0, step=1, limit=4
    $region2: #{tpu_custom_call.1} parent=1 // loop_pre_header
      _
    $region3: #{tpu_custom_call.1} parent=1 // loop_header
      %s13 = sphi 0, %s17
      %p14 = scmp.ge.s32.totalorder %s13, 4
      %s23 = sphi 0, %s25
      %s26 = sphi 0, %s23
      %s27 = sphi 0, %s26
      %s43 = sphi 0, %s27
      %s47 = sphi 0, %s47
      %s49 = sphi 0, %s47
      %s50 = sphi 0, %s49
      %s64 = sphi 0, %s50
      %s68 = sphi 0, %s68
      %s70 = sphi 0, %s68
      %s71 = sphi 0, %s70
      %s85 = sphi 0, %s71
      %s91 = sphi 0, %s93
      %s94 = sphi 0, %s91
      %s95 = sphi 0, %s94
      %s111 = sphi 0, %s95
    $region4: #{tpu_custom_call.1} parent=1 // loop_header_branch
      %16 = sbr.rel (%p14) target = $region8
    $region5: #{tpu_custom_call.1} parent=1 // loop_body
      %s18 = ssub.s32 %s13, 1
      %s19 = ssub.s32 %s13, 2
      %s20 = sadd.s32 %s13, 1
      %s21 = ssub.s32 %s13, %s20
      %p22 = scmp.eq.s32.totalorder %s21, 0
      %s24 = sadd.s32 %s23, 1
      %s25 = scalar_select %p22, %s23, %s24
      %p28 = pneg %p22
      %p29 = scmp.eq.s32.totalorder %s13, 1
      %p30 = por %p28, %p29
      %p31 = scmp.ne.s32.totalorder %s23, %s26
      %p32 = scmp.eq.s32.totalorder %s13, 0
      %p33 = por %p31, %p32
      %p34 = scmp.ne.s32.totalorder %s23, %s26
      %p35 = scmp.eq.s32.totalorder %s18, 1
      %p36 = por %p34, %p35
      %p37 = scmp.ne.s32.totalorder %s26, %s27
      %p38 = scmp.eq.s32.totalorder %s18, 0
      %p39 = por %p37, %p38
      %p40 = scmp.ne.s32.totalorder %s26, %s27
      %p41 = scmp.eq.s32.totalorder %s19, 1
      %p42 = por %p40, %p41
      %p44 = scmp.ne.s32.totalorder %s27, %s43
      %p45 = scmp.eq.s32.totalorder %s19, 0
      %p46 = por %p44, %p45
      %s48 = sadd.s32 %s47, 1
      %p51 = scmp.eq.s32.totalorder %s13, 1
      %p52 = scmp.ne.s32.totalorder %s47, %s49
      %p53 = scmp.eq.s32.totalorder %s13, 0
      %p54 = por %p52, %p53
      %p55 = scmp.ne.s32.totalorder %s47, %s49
      %p56 = scmp.eq.s32.totalorder %s18, 1
      %p57 = por %p55, %p56
      %p58 = scmp.ne.s32.totalorder %s49, %s50
      %p59 = scmp.eq.s32.totalorder %s18, 0
      %p60 = por %p58, %p59
      %p61 = scmp.ne.s32.totalorder %s49, %s50
      %p62 = scmp.eq.s32.totalorder %s19, 1
      %p63 = por %p61, %p62
      %p65 = scmp.ne.s32.totalorder %s50, %s64
      %p66 = scmp.eq.s32.totalorder %s19, 0
      %p67 = por %p65, %p66
      %s69 = sadd.s32 %s68, 1
      %p72 = scmp.eq.s32.totalorder %s13, 1
      %p73 = scmp.ne.s32.totalorder %s68, %s70
      %p74 = scmp.eq.s32.totalorder %s13, 0
      %p75 = por %p73, %p74
      %p76 = scmp.ne.s32.totalorder %s68, %s70
      %p77 = scmp.eq.s32.totalorder %s18, 1
      %p78 = por %p76, %p77
      %p79 = scmp.ne.s32.totalorder %s70, %s71
      %p80 = scmp.eq.s32.totalorder %s18, 0
      %p81 = por %p79, %p80
      %p82 = scmp.ne.s32.totalorder %s70, %s71
      %p83 = scmp.eq.s32.totalorder %s19, 1
      %p84 = por %p82, %p83
      %p86 = scmp.ne.s32.totalorder %s71, %s85
      %p87 = scmp.eq.s32.totalorder %s19, 0
      %p88 = por %p86, %p87
      %s89 = ssub.s32 %s13, %s20
      %p90 = scmp.eq.s32.totalorder %s89, 0
      %s92 = sadd.s32 %s91, 1
      %s93 = scalar_select %p90, %s91, %s92
      %p96 = pneg %p90
      %p97 = scmp.eq.s32.totalorder %s13, 1
      %p98 = por %p96, %p97
      %p99 = scmp.ne.s32.totalorder %s91, %s94
      %p100 = scmp.eq.s32.totalorder %s13, 0
      %p101 = por %p99, %p100
      %p102 = scmp.ne.s32.totalorder %s91, %s94
      %p103 = scmp.eq.s32.totalorder %s18, 1
      %p104 = por %p102, %p103
      %p105 = scmp.ne.s32.totalorder %s94, %s95
      %p106 = scmp.eq.s32.totalorder %s18, 0
      %p107 = por %p105, %p106
      %p108 = scmp.ne.s32.totalorder %s94, %s95
      %p109 = scmp.eq.s32.totalorder %s19, 1
      %p110 = por %p108, %p109
      %p112 = scmp.ne.s32.totalorder %s95, %s111
      %p113 = scmp.eq.s32.totalorder %s19, 0
      %p114 = por %p112, %p113
      %p115 = scmp.le.s32.totalorder 1, %s13
      %p116 = scmp.lt.s32.totalorder %s13, 3
      %p117 = pnand %p115, %p116
      %p118 = pneg %p117
      // Predicated region
      $region9: #{tpu_custom_call.1} parent=5 // pred_check
        _
      $region10: #{tpu_custom_call.1} parent=5 // pred_check_branch
        %120 = sbr.rel (%p117) target = $region12
      $region11: #{tpu_custom_call.1} parent=5 // pred_region
        %s121 = ssub.s32 %s13, 1
        // Predicated region
        $region13: #{tpu_custom_call.1} parent=11 // pred_check
          %p122 = pneg %p60
        $region14: #{tpu_custom_call.1} parent=11 // pred_check_branch
          %124 = sbr.rel (%p122) target = $region16
        $region15: #{tpu_custom_call.1} parent=11 // pred_region
          %126 = vsyncadd [#allocation3], 0
          %s127 = sshll.u32 %s1, 4
          %s128 = int_to_ptr.hbm [resolvable:$true] %s127
          %s129 = sshll.u32 [#allocation2], 4
          %s130 = int_to_ptr.vmem [resolvable:$true] %s129
          %135 = dma.hbm_to_vmem [thread:$0]  %s128, 3072, %s130, [#allocation3], 64, 64, 4
        $region16: #{tpu_custom_call.1} parent=11 // pred_fallthru
          _
        // Predicated region
        $region17: #{tpu_custom_call.1} parent=11 // pred_check
          %p136 = pneg %p81
        $region18: #{tpu_custom_call.1} parent=11 // pred_check_branch
          %138 = sbr.rel (%p136) target = $region20
        $region19: #{tpu_custom_call.1} parent=11 // pred_region
          _
        $region20: #{tpu_custom_call.1} parent=11 // pred_fallthru
          _
      $region12: #{tpu_custom_call.1} parent=5 // pred_fallthru
        _
      %p139 = scmp.lt.s32.totalorder %s13, 2
      // Predicated region
      $region21: #{tpu_custom_call.1} parent=5 // pred_check
        %p140 = pneg %p139
      $region22: #{tpu_custom_call.1} parent=5 // pred_check_branch
        %142 = sbr.rel (%p140) target = $region24
      $region23: #{tpu_custom_call.1} parent=5 // pred_region
        // Predicated region
        $region25: #{tpu_custom_call.1} parent=23 // pred_check
          %p143 = pneg %p33
        $region26: #{tpu_custom_call.1} parent=23 // pred_check_branch
          %145 = sbr.rel (%p143) target = $region28
        $region27: #{tpu_custom_call.1} parent=23 // pred_region
          %p146 = scmp.lt.s32.totalorder %s13, 1
          %s147 = scalar_select %p146, %s13, 1
          %s148 = smul.addr %s147, 3
          %s149 = smul.addr %s148, 4
          %s150 = scalar_lea.vmem %s0, %s149
        $region28: #{tpu_custom_call.1} parent=23 // pred_fallthru
          _
      $region24: #{tpu_custom_call.1} parent=5 // pred_fallthru
        _
      %p151 = scmp.le.s32.totalorder 1, %s13
      %p152 = scmp.lt.s32.totalorder %s13, 3
      %p153 = pnand %p151, %p152
      %p154 = pneg %p153
      // Predicated region
      $region29: #{tpu_custom_call.1} parent=5 // pred_check
        _
      $region30: #{tpu_custom_call.1} parent=5 // pred_check_branch
        %156 = sbr.rel (%p153) target = $region32
      $region31: #{tpu_custom_call.1} parent=5 // pred_region
        %s157 = ssub.s32 %s13, 1
        // Predicated region
        $region33: #{tpu_custom_call.1} parent=31 // pred_check
          %p158 = pneg %p60
        $region34: #{tpu_custom_call.1} parent=31 // pred_check_branch
          %160 = sbr.rel (%p158) target = $region36
        $region35: #{tpu_custom_call.1} parent=31 // pred_region
          %162 = dma.done [#allocation3], 3072
        $region36: #{tpu_custom_call.1} parent=31 // pred_fallthru
          _
        %p163 = scmp.lt.s32.totalorder %s18, 1
        %s164 = scalar_select %p163, %s18, 1
        %s165 = smul.addr %s164, 3
        %s166 = smul.addr %s165, 4
        %s167 = scalar_lea.vmem %s0, %s166
        %p168 = pneg %p39
        %p169 = pneg %p36
        %p170 = pneg %p60
        %p171 = pneg %p57
        %p172 = pneg %p81
        %p173 = pneg %p78
        %p174 = pneg %p107
        %p175 = pneg %p104
        %s176 = sand.u32 %s94, 1
        %s177 = scalar_lea.sflag [#allocation4], %s176
        %s178 = sand.u32 %s94, 1
        %s179 = smul.addr %s178, 16
        %s180 = scalar_lea.vmem [#allocation5], %s179
        %p181 = scmp.lt.s32.totalorder %s18, 1
        %s182 = scalar_select %p181, %s18, 1
        %s183 = smul.addr %s182, 3
        %s184 = smul.addr %s183, 4
        %s185 = scalar_lea.vmem %s0, %s184
        %v186 = vld [vmem:[%s185] sm:$0xf]
        %v187 = vld [vmem:[%s185 + $0x4] sm:$0xf]
        %v188 = vld [vmem:[#allocation2] sm:$0xf]
        %v189 = vld [vmem:[#allocation2 + $0x4] sm:$0xf]
        %v190 = vld [vmem:[#allocation2 + $0x8] sm:$0xf]
        %v191 = vld [vmem:[#allocation2 + $0xc] sm:$0xf]
        %v192 = vld [vmem:[#allocation2 + $0x10] sm:$0xf]
        %v193 = vld [vmem:[#allocation2 + $0x14] sm:$0xf]
        %v194 = vld [vmem:[#allocation2 + $0x18] sm:$0xf]
        %v195 = vld [vmem:[#allocation2 + $0x1c] sm:$0xf]
        %v196 = vld [vmem:[#allocation2 + $0x20] sm:$0xf]
        %v197 = vld [vmem:[#allocation2 + $0x24] sm:$0xf]
        %v198 = vld [vmem:[#allocation2 + $0x28] sm:$0xf]
        %v199 = vld [vmem:[#allocation2 + $0x2c] sm:$0xf]
        %v200 = vld [vmem:[#allocation2 + $0x30] sm:$0xf]
        %v201 = vld [vmem:[#allocation2 + $0x34] sm:$0xf]
        %v202 = vld [vmem:[#allocation2 + $0x38] sm:$0xf]
        %v203 = vld [vmem:[#allocation2 + $0x3c] sm:$0xf]
        %v204 = vld [vmem:[%s185 + $0x8] sm:$0x1]
        %s205 = scalar_lea.vmem [#allocation2], 64
        %v206 = vld [vmem:[%s205] sm:$0xf]
        %v207 = vld [vmem:[%s205 + $0x4] sm:$0xf]
        %v208 = vld [vmem:[%s205 + $0x8] sm:$0xf]
        %v209 = vld [vmem:[%s205 + $0xc] sm:$0xf]
        %v210 = vld [vmem:[%s205 + $0x10] sm:$0xf]
        %v211 = vld [vmem:[%s205 + $0x14] sm:$0xf]
        %v212 = vld [vmem:[%s205 + $0x18] sm:$0xf]
        %v213 = vld [vmem:[%s205 + $0x1c] sm:$0xf]
        %v214 = vld [vmem:[%s205 + $0x20] sm:$0xf]
        %v215 = vld [vmem:[%s205 + $0x24] sm:$0xf]
        %v216 = vld [vmem:[%s205 + $0x28] sm:$0xf]
        %v217 = vld [vmem:[%s205 + $0x2c] sm:$0xf]
        %v218 = vld [vmem:[%s205 + $0x30] sm:$0xf]
        %v219 = vld [vmem:[%s205 + $0x34] sm:$0xf]
        %v220 = vld [vmem:[%s205 + $0x38] sm:$0xf]
        %v221 = vld [vmem:[%s205 + $0x3c] sm:$0xf]
        %v225 = vunpack.c.l.b16 %v186
        %v226 = vunpack.c.l.b16 %v187
        %v227 = vunpack.c.l.b16 %v204
        %v228 = vpack.c.b16 %v226, %v225
        %v229 = vpack.c.b16 %v227, %v227
        %vm230 = vsmask.f32 7424
        %v232 = vshrl.u32 %v228, 16
        %v234 = vshll.u32 %v228, 16
        %v236 = vrot.slane %v234, 1
        %v237 = vor.u32 %v232, %v236
        %v239 = vshll.u32 %v229, 16
        %v241 = vrot.slane %v239, 1
        %v242 = vsel %vm230, %v237, %v241
        %v260 = vunpack.c.l.b16 %v206
        %v261 = vunpack.c.l.b16 %v207
        %v262 = vunpack.c.l.b16 %v208
        %v263 = vunpack.c.l.b16 %v209
        %v264 = vunpack.c.l.b16 %v210
        %v265 = vunpack.c.l.b16 %v211
        %v266 = vunpack.c.l.b16 %v212
        %v267 = vunpack.c.l.b16 %v213
        %v268 = vunpack.c.l.b16 %v214
        %v269 = vunpack.c.l.b16 %v215
        %v270 = vunpack.c.l.b16 %v216
        %v271 = vunpack.c.l.b16 %v217
        %v272 = vunpack.c.l.b16 %v218
        %v273 = vunpack.c.l.b16 %v219
        %v274 = vunpack.c.l.b16 %v220
        %v275 = vunpack.c.l.b16 %v221
        %v276 = vpack.c.b16 %v261, %v260
        %v277 = vpack.c.b16 %v263, %v262
        %v278 = vpack.c.b16 %v265, %v264
        %v279 = vpack.c.b16 %v267, %v266
        %v280 = vpack.c.b16 %v269, %v268
        %v281 = vpack.c.b16 %v271, %v270
        %v282 = vpack.c.b16 %v273, %v272
        %v283 = vpack.c.b16 %v275, %v274
        %292 = vmatpush.bf16.msra.mxu0 %v283
        %293 = vmatpush.bf16.msra.mxu0 %v282
        %294 = vmatpush.bf16.msra.mxu0 %v281
        %295 = vmatpush.bf16.msra.mxu0 %v280
        %296 = vmatpush.bf16.msra.mxu0 %v279
        %297 = vmatpush.bf16.msra.mxu0 %v278
        %298 = vmatpush.bf16.msra.mxu0 %v277
        %299 = vmatpush.bf16.msra.mxu0 %v276
        %300 = vmatmul.bf16.gmra.mxu0 %v242
        %v301 = vpop.f32.mrf.mxu0
        %v302 = vadd.f32 0.0, %v301
        %v303 = vpop.f32.mrf.mxu0
        %v304 = vadd.f32 0.0, %v303
        %305 = vdwg.mxu0
        %v323 = vunpack.c.l.b16 %v188
        %v324 = vunpack.c.l.b16 %v189
        %v325 = vunpack.c.l.b16 %v190
        %v326 = vunpack.c.l.b16 %v191
        %v327 = vunpack.c.l.b16 %v192
        %v328 = vunpack.c.l.b16 %v193
        %v329 = vunpack.c.l.b16 %v194
        %v330 = vunpack.c.l.b16 %v195
        %v331 = vunpack.c.l.b16 %v196
        %v332 = vunpack.c.l.b16 %v197
        %v333 = vunpack.c.l.b16 %v198
        %v334 = vunpack.c.l.b16 %v199
        %v335 = vunpack.c.l.b16 %v200
        %v336 = vunpack.c.l.b16 %v201
        %v337 = vunpack.c.l.b16 %v202
        %v338 = vunpack.c.l.b16 %v203
        %v339 = vpack.c.b16 %v324, %v323
        %v340 = vpack.c.b16 %v326, %v325
        %v341 = vpack.c.b16 %v328, %v327
        %v342 = vpack.c.b16 %v330, %v329
        %v343 = vpack.c.b16 %v332, %v331
        %v344 = vpack.c.b16 %v334, %v333
        %v345 = vpack.c.b16 %v336, %v335
        %v346 = vpack.c.b16 %v338, %v337
        %355 = vmatpush.bf16.msra.mxu0 %v346
        %356 = vmatpush.bf16.msra.mxu0 %v345
        %357 = vmatpush.bf16.msra.mxu0 %v344
        %358 = vmatpush.bf16.msra.mxu0 %v343
        %359 = vmatpush.bf16.msra.mxu0 %v342
        %360 = vmatpush.bf16.msra.mxu0 %v341
        %361 = vmatpush.bf16.msra.mxu0 %v340
        %362 = vmatpush.bf16.msra.mxu0 %v339
        %363 = vmatmul.bf16.gmra.mxu0 %v228
        %v364 = vpop.f32.mrf.mxu0
        %v365 = vadd.f32 %v302, %v364
        %v366 = vpop.f32.mrf.mxu0
        %v367 = vadd.f32 %v304, %v366
        %368 = vdwg.mxu0
        %v369 = vld [vmem:[%s185] sm:$0xe]
        %s370 = scalar_lea.vmem [#allocation2], 128
        %v371 = vld [vmem:[%s370] sm:$0xf]
        %v372 = vld [vmem:[%s370 + $0x4] sm:$0xf]
        %v373 = vld [vmem:[%s370 + $0x8] sm:$0xf]
        %v374 = vld [vmem:[%s370 + $0xc] sm:$0xf]
        %v375 = vld [vmem:[%s370 + $0x10] sm:$0xf]
        %v376 = vld [vmem:[%s370 + $0x14] sm:$0xf]
        %v377 = vld [vmem:[%s370 + $0x18] sm:$0xf]
        %v378 = vld [vmem:[%s370 + $0x1c] sm:$0xf]
        %v379 = vld [vmem:[%s370 + $0x20] sm:$0xf]
        %v380 = vld [vmem:[%s370 + $0x24] sm:$0xf]
        %v381 = vld [vmem:[%s370 + $0x28] sm:$0xf]
        %v382 = vld [vmem:[%s370 + $0x2c] sm:$0xf]
        %v383 = vld [vmem:[%s370 + $0x30] sm:$0xf]
        %v384 = vld [vmem:[%s370 + $0x34] sm:$0xf]
        %v385 = vld [vmem:[%s370 + $0x38] sm:$0xf]
        %v386 = vld [vmem:[%s370 + $0x3c] sm:$0xf]
        %v388 = vunpack.c.l.b16 %v369
        %v389 = vpack.c.b16 %v226, %v388
        %vm390 = vcmask 1046528
        %v391 = vrot.slane %v389, 1
        %v392 = vrot.slane %v229, 1
        %v393 = vsel %vm390, %v391, %v392
        %v411 = vunpack.c.l.b16 %v371
        %v412 = vunpack.c.l.b16 %v372
        %v413 = vunpack.c.l.b16 %v373
        %v414 = vunpack.c.l.b16 %v374
        %v415 = vunpack.c.l.b16 %v375
        %v416 = vunpack.c.l.b16 %v376
        %v417 = vunpack.c.l.b16 %v377
        %v418 = vunpack.c.l.b16 %v378
        %v419 = vunpack.c.l.b16 %v379
        %v420 = vunpack.c.l.b16 %v380
        %v421 = vunpack.c.l.b16 %v381
        %v422 = vunpack.c.l.b16 %v382
        %v423 = vunpack.c.l.b16 %v383
        %v424 = vunpack.c.l.b16 %v384
        %v425 = vunpack.c.l.b16 %v385
        %v426 = vunpack.c.l.b16 %v386
        %v427 = vpack.c.b16 %v412, %v411
        %v428 = vpack.c.b16 %v414, %v413
        %v429 = vpack.c.b16 %v416, %v415
        %v430 = vpack.c.b16 %v418, %v417
        %v431 = vpack.c.b16 %v420, %v419
        %v432 = vpack.c.b16 %v422, %v421
        %v433 = vpack.c.b16 %v424, %v423
        %v434 = vpack.c.b16 %v426, %v425
        %443 = vmatpush.bf16.msra.mxu0 %v434
        %444 = vmatpush.bf16.msra.mxu0 %v433
        %445 = vmatpush.bf16.msra.mxu0 %v432
        %446 = vmatpush.bf16.msra.mxu0 %v431
        %447 = vmatpush.bf16.msra.mxu0 %v430
        %448 = vmatpush.bf16.msra.mxu0 %v429
        %449 = vmatpush.bf16.msra.mxu0 %v428
        %450 = vmatpush.bf16.msra.mxu0 %v427
        %451 = vmatmul.bf16.gmra.mxu0 %v393
        %v452 = vpop.f32.mrf.mxu0
        %v453 = vadd.f32 0.0, %v452
        %v454 = vpop.f32.mrf.mxu0
        %v455 = vadd.f32 0.0, %v454
        %456 = vdwg.mxu0
        %v457 = vadd.f32 %v365, %v453
        %v458 = vadd.f32 %v367, %v455
        %v459 = vld [vmem:[%s2] sm:$0x1]
        %v460 = vperm.slane %v459, 0
        %v461 = vmul.f32 %v457, %v460
        %v462 = vmul.f32 %v458, %v460
        %v463 = vld [vmem:[%s2 + $0x1] sm:$0x1]
        %v464 = vperm.slane %v463, 0
        %v465 = vadd.f32 %v461, %v464
        %v466 = vadd.f32 %v462, %v464
        %v467 = vmax.f32 %v465, 0.0
        %v468 = vmax.f32 %v466, 0.0
        %469 = vst [vmem:[%s180] sm:$0xff] %v467
        %470 = vst [vmem:[%s180 + $0x8] sm:$0xff] %v468
        %s471 = sand.u32 %s94, 1
        %s472 = scalar_lea.sflag [#allocation4], %s471
        %s473 = sand.u32 %s94, 1
        %s474 = smul.addr %s473, 16
        %s475 = scalar_lea.vmem [#allocation5], %s474
        // Predicated region
        $region37: #{tpu_custom_call.1} parent=31 // pred_check
          %p476 = pneg %p104
        $region38: #{tpu_custom_call.1} parent=31 // pred_check_branch
          %478 = sbr.rel (%p476) target = $region40
        $region39: #{tpu_custom_call.1} parent=31 // pred_region
          %480 = vsyncadd %s472, 0
          %s481 = smul.addr %s18, 2
          %s482 = smul.addr %s481, 8
          %s483 = scalar_lea.hbm %s3, %s482
          %s484 = sshll.u32 %s475, 4
          %s485 = int_to_ptr.vmem [resolvable:$true] %s484
          %s486 = sshll.u32 %s483, 4
          %s487 = int_to_ptr.hbm [resolvable:$true] %s486
          %492 = dma.vmem_to_hbm [thread:$0]  %s485, 256, %s487, %s472, 128, 128, 8
        $region40: #{tpu_custom_call.1} parent=31 // pred_fallthru
          _
      $region32: #{tpu_custom_call.1} parent=5 // pred_fallthru
        _
      %p493 = scmp.le.s32.totalorder 2, %s13
      // Predicated region
      $region41: #{tpu_custom_call.1} parent=5 // pred_check
        %p494 = pneg %p493
      $region42: #{tpu_custom_call.1} parent=5 // pred_check_branch
        %496 = sbr.rel (%p494) target = $region44
      $region43: #{tpu_custom_call.1} parent=5 // pred_region
        %s497 = ssub.s32 %s13, 2
        // Predicated region
        $region45: #{tpu_custom_call.1} parent=43 // pred_check
          %p498 = pneg %p110
        $region46: #{tpu_custom_call.1} parent=43 // pred_check_branch
          %500 = sbr.rel (%p498) target = $region48
        $region47: #{tpu_custom_call.1} parent=43 // pred_region
          %s501 = sand.u32 %s95, 1
          %s502 = scalar_lea.sflag [#allocation4], %s501
          %s503 = sand.u32 %s95, 1
          %s504 = smul.addr %s503, 16
          %s505 = scalar_lea.vmem [#allocation5], %s504
          %507 = dma.done %s502, 256
        $region48: #{tpu_custom_call.1} parent=43 // pred_fallthru
          _
      $region44: #{tpu_custom_call.1} parent=5 // pred_fallthru
        _
    $region6: #{tpu_custom_call.1} parent=1 // loop_footer
      %s17 = sadd.s32 1, %s13
    $region7: #{tpu_custom_call.1} parent=1 // loop_footer_branch
      %12 = sbr.rel target = $region3
    $region8: #{tpu_custom_call.1} parent=1 // loop_exit
      _
    %508 = vsyncpa [#allocation3], 1
    %s509 = scalar_lea.sflag [#allocation3], 1
    %510 = vsyncpa %s509, 1
    %511 = vsyncpa [#allocation4], 1
    %s512 = scalar_lea.sflag [#allocation4], 1
    %513 = vsyncpa %s512, 1

</llo_original>
